<compile_context>
chip_gen: v7x
topology: tpu7x:2x2x1
jax: 0.10.0
libtpu: 0.0.40
codegen_flags: <defaults>
</compile_context>

<pallas_src>
import functools

import jax
import jax.numpy as jnp
from jax.experimental import pallas as pl
from jax.experimental.pallas import tpu as pltpu

_LANES = 128
_SUBLANES = 8
# Finite "minus infinity": exp(_NEG_BIG - anything_reasonable) == 0.0f, and
# _NEG_BIG - _NEG_BIG == 0 (no inf - inf NaNs on fully padded positions).
_NEG_BIG = float(jnp.finfo(jnp.float32).min)


def _round_up(a, b):
    return -(-a // b) * b


def _fool_loss_kernel(x_ref, o_ref, m_sc, s_sc, t_sc, *,
                      slabs_per_tile, idx_tile, idx_row, idx_lane):
    """Online softmax denominator over lane-dense class tiles.

    x_ref : (rows_per_tile, 128) tile of the padded, reshaped row 0
    o_ref : (1, 1) f32 output block (same block every grid step)
    m_sc  : (8, 128) f32 per-(sublane, lane) running max
    s_sc  : (8, 128) f32 per-(sublane, lane) running sum of exp
    t_sc  : (1, 1)  f32 raw logit at the target index
    """
    k = pl.program_id(0)
    nk = pl.num_programs(0)

    @pl.when(k == 0)
    def _init():
        m_sc[...] = jnp.full_like(m_sc, _NEG_BIG)
        s_sc[...] = jnp.zeros_like(s_sc)
        t_sc[...] = jnp.zeros_like(t_sc)

    xt = x_ref[...].astype(jnp.float32)                  # (rows_per_tile, 128)

    # Capture the raw target logit in the (statically known) tile holding it.
    @pl.when(k == idx_tile)
    def _capture():
        t_sc[...] = xt[idx_row:idx_row + 1, idx_lane:idx_lane + 1]

    # Fold this tile into the vreg-shaped accumulators.  The reshape only
    # splits the major dim and the axis-0 reductions are vreg-vs-vreg
    # elementwise ops, so the hot loop is pure VPU + EUP work; the single
    # cross-lane/sublane (XLU) reduction is deferred to the finalize step.
    if slabs_per_tile == 1:
        m_new = jnp.maximum(m_sc[...], xt)                          # (8, 128)
        tile_sum = jnp.exp(xt - m_new)                              # (8, 128)
    else:
        xg = xt.reshape(slabs_per_tile, _SUBLANES, _LANES)
        m_new = jnp.maximum(m_sc[...], jnp.max(xg, axis=0))         # (8, 128)
        tile_sum = jnp.sum(jnp.exp(xg - m_new[None, :, :]), axis=0)
    s_sc[...] = s_sc[...] * jnp.exp(m_sc[...] - m_new) + tile_sum
    m_sc[...] = m_new

    @pl.when(k == nk - 1)
    def _finalize():
        # Single cross-lane/sublane reduction, once per call.
        m_all = jnp.max(m_sc[...], keepdims=True)                   # (1, 1)
        s_all = jnp.sum(s_sc[...] * jnp.exp(m_sc[...] - m_all), keepdims=True)
        p = jnp.exp(t_sc[...] - m_all) * pl.reciprocal(s_all, approx=True)
        o_ref[...] = 1.0 - p


@functools.partial(jax.jit, static_argnums=(1, 2))
def _fool_loss_impl(x, index, tile_rows_max):
    _, n = x.shape

    # --- lane/sublane-dense layout for the class axis ------------------------
    packing = {4: 8, 2: 16, 1: 32}.get(jnp.dtype(x.dtype).itemsize, 8)
    rows_needed = _round_up(n, _LANES) // _LANES           # rows of 128 classes
    tile_rows = _round_up(max(1, min(tile_rows_max, rows_needed)), packing)
    num_tiles = -(-rows_needed // tile_rows)
    rows_total = num_tiles * tile_rows
    n_pad = rows_total * _LANES

    # slice row 0 + pad + reshape: fuses into one tiny copy under jit; the
    # other B-1 rows are never touched by the kernel.
    row = jax.lax.slice(x, (0, 0), (1, n))                 # (1, n)
    if n_pad > n:
        if jnp.issubdtype(x.dtype, jnp.floating):
            pad_val = float(jnp.finfo(x.dtype).min)
        else:
            pad_val = int(jnp.iinfo(x.dtype).min)
        row = jnp.pad(row, ((0, 0), (0, n_pad - n)), constant_values=pad_val)
    x2d = row.reshape(rows_total, _LANES)

    row_of_idx, lane_of_idx = divmod(index, _LANES)
    kernel = functools.partial(
        _fool_loss_kernel,
        slabs_per_tile=tile_rows // _SUBLANES,
        idx_tile=row_of_idx // tile_rows,
        idx_row=row_of_idx % tile_rows,
        idx_lane=lane_of_idx,
    )

    out = pl.pallas_call(
        kernel,
        out_shape=jax.ShapeDtypeStruct((1, 1), jnp.float32),
        grid_spec=pltpu.PrefetchScalarGridSpec(
            num_scalar_prefetch=0,
            grid=(num_tiles,),
            in_specs=[pl.BlockSpec((tile_rows, _LANES), lambda k: (k, 0))],
            out_specs=pl.BlockSpec((1, 1), lambda k: (0, 0)),
            scratch_shapes=[pltpu.VMEM((_SUBLANES, _LANES), jnp.float32),  # running max
                            pltpu.VMEM((_SUBLANES, _LANES), jnp.float32),  # running sum
                            pltpu.VMEM((1, 1), jnp.float32)],              # target logit
        ),
        compiler_params=pltpu.CompilerParams(
            dimension_semantics=("arbitrary",),       # class axis is a reduction
            vmem_limit_bytes=32 * 1024 * 1024,        # safe on v5e/v6e/v7x
        ),
    )(x2d)
    return out[0, 0]                                   # scalar, like PyTorch


def fool_loss(x, index, *, tile_rows_max=2048):
    """1 - softmax(x, axis=1)[0, index], computed in a Pallas TPU kernel."""
    assert x.ndim == 2, "FoolLoss expects a 2-D (batch, num_classes) input"
    n = x.shape[1]
    index = int(index)
    assert 0 <= index < n, f"index {index} out of range for {n} classes"
    # TODO(synk): if `index` ever needs to be a runtime/traced value, pass it
    # via PrefetchScalarGridSpec(num_scalar_prefetch=1) instead of baking it in.
    # TODO(synk): for multi-million-class rows on v7x, shard the class axis
    # across the two TensorCores and combine the two (m, s) partials; the
    # single-TC streaming reduction here is the simple general-purpose default.
    return _fool_loss_impl(x, index, int(tile_rows_max))


if __name__ == "__main__":
    key = jax.random.PRNGKey(0)

    # Shapes implied by the module: (batch, num_classes) logits.
    batch, num_classes = 2, 16
    x = jax.random.normal(key, (batch, num_classes), dtype=jnp.float32)
    index = 3  # the module's static __init__ argument

    result = jax.block_until_ready(fool_loss(x, index))
    ref = 1.0 - jax.nn.softmax(x, axis=1)[0, index]
    assert jnp.allclose(result, ref, atol=2e-3), (result, ref)

    # Multi-tile + multi-slab online-softmax path (small tiles forced).
    k2 = jax.random.PRNGKey(1)
    x2 = jax.random.normal(k2, (2, 3000), dtype=jnp.float32)
    r2 = jax.block_until_ready(fool_loss(x2, 2999, tile_rows_max=16))
    ref2 = 1.0 - jax.nn.softmax(x2, axis=1)[0, 2999]
    assert jnp.allclose(r2, ref2, atol=2e-3), (r2, ref2)

    # bf16 input (16-row sublane packing) with a padded class axis.
    k3 = jax.random.PRNGKey(2)
    x3 = jax.random.normal(k3, (3, 300), dtype=jnp.bfloat16)
    r3 = jax.block_until_ready(fool_loss(x3, 7))
    ref3 = 1.0 - jax.nn.softmax(x3.astype(jnp.float32), axis=1)[0, 7]
    assert jnp.allclose(r3, ref3, atol=2e-2), (r3, ref3)

    print("KERNEL_OK")
</pallas_src>

<mosaic_0001>
module attributes {stable_mosaic.version = 11 : i64} {
  func.func @_fool_loss_kernel(%arg0: i32, %arg1: memref<8x128xf32, #tpu.memory_space<vmem>>, %arg2: memref<1x1xf32, #tpu.memory_space<vmem>>, %arg3: memref<8x128xf32, #tpu.memory_space<vmem>>, %arg4: memref<8x128xf32, #tpu.memory_space<vmem>>, %arg5: memref<1x1xf32, #tpu.memory_space<vmem>>) attributes {dimension_semantics = [#tpu.dimension_semantics<arbitrary>], iteration_bounds = array<i64: 1>, scalar_prefetch = 0 : i64, scratch_operands = 3 : i64, tpu.core_type = #tpu.core_type<tc>, window_params = [{transform_indices = @transform_0, window_bounds = array<i64: 8, 128>}, {pipeline_mode = #tpu.pipeline_mode<synchronous>, transform_indices = @transform_1, window_bounds = array<i64: 1, 1>}]} {
    %c0_i32 = arith.constant 0 : i32
    %0 = arith.cmpi eq, %arg0, %c0_i32 : i32
    %1 = arith.extui %0 : i1 to i32
    %c0_i32_0 = arith.constant 0 : i32
    %2 = arith.cmpi ne, %1, %c0_i32_0 : i32
    scf.if %2 {
      %cst = arith.constant -3.40282347E+38 : f32
      %22 = vector.broadcast %cst : f32 to vector<8x128xf32>
      %c0_16 = arith.constant 0 : index
      %c0_17 = arith.constant 0 : index
      %23 = vector.load %arg3[%c0_16, %c0_17] : memref<8x128xf32, #tpu.memory_space<vmem>>, vector<8x128xf32>
      tpu.vector_store %arg3[%c0_16, %c0_17], %22 {strides = array<i32>} : memref<8x128xf32, #tpu.memory_space<vmem>>, vector<8x128xf32>,
      %cst_18 = arith.constant 0.000000e+00 : f32
      %24 = vector.broadcast %cst_18 : f32 to vector<8x128xf32>
      %c0_19 = arith.constant 0 : index
      %c0_20 = arith.constant 0 : index
      %25 = vector.load %arg4[%c0_19, %c0_20] : memref<8x128xf32, #tpu.memory_space<vmem>>, vector<8x128xf32>
      tpu.vector_store %arg4[%c0_19, %c0_20], %24 {strides = array<i32>} : memref<8x128xf32, #tpu.memory_space<vmem>>, vector<8x128xf32>,
      %cst_21 = arith.constant 0.000000e+00 : f32
      %26 = vector.broadcast %cst_21 : f32 to vector<1x1xf32>
      %c0_22 = arith.constant 0 : index
      %c0_23 = arith.constant 0 : index
      %27 = vector.load %arg5[%c0_22, %c0_23] : memref<1x1xf32, #tpu.memory_space<vmem>>, vector<1x1xf32>
      tpu.vector_store %arg5[%c0_22, %c0_23], %26 {strides = array<i32>} : memref<1x1xf32, #tpu.memory_space<vmem>>, vector<1x1xf32>,
    } else {
    }
    %c0 = arith.constant 0 : index
    %c0_1 = arith.constant 0 : index
    %3 = vector.load %arg1[%c0, %c0_1] : memref<8x128xf32, #tpu.memory_space<vmem>>, vector<8x128xf32>
    %c0_i32_2 = arith.constant 0 : i32
    %4 = arith.cmpi eq, %arg0, %c0_i32_2 : i32
    %5 = arith.extui %4 : i1 to i32
    %c0_i32_3 = arith.constant 0 : i32
    %6 = arith.cmpi ne, %5, %c0_i32_3 : i32
    scf.if %6 {
      %22 = vector.extract_strided_slice %3 {offsets = [0, 3], sizes = [1, 1], strides = [1, 1]} : vector<8x128xf32> to vector<1x1xf32>
      %c0_16 = arith.constant 0 : index
      %c0_17 = arith.constant 0 : index
      %23 = vector.load %arg5[%c0_16, %c0_17] : memref<1x1xf32, #tpu.memory_space<vmem>>, vector<1x1xf32>
      tpu.vector_store %arg5[%c0_16, %c0_17], %22 {strides = array<i32>} : memref<1x1xf32, #tpu.memory_space<vmem>>, vector<1x1xf32>,
    } else {
    }
    %c0_4 = arith.constant 0 : index
    %c0_5 = arith.constant 0 : index
    %7 = vector.load %arg3[%c0_4, %c0_5] : memref<8x128xf32, #tpu.memory_space<vmem>>, vector<8x128xf32>
    %8 = arith.maximumf %7, %3 : vector<8x128xf32>
    %9 = arith.subf %3, %8 : vector<8x128xf32>
    %10 = math.exp %9 : vector<8x128xf32>
    %c0_6 = arith.constant 0 : index
    %c0_7 = arith.constant 0 : index
    %11 = vector.load %arg4[%c0_6, %c0_7] : memref<8x128xf32, #tpu.memory_space<vmem>>, vector<8x128xf32>
    %c0_8 = arith.constant 0 : index
    %c0_9 = arith.constant 0 : index
    %12 = vector.load %arg3[%c0_8, %c0_9] : memref<8x128xf32, #tpu.memory_space<vmem>>, vector<8x128xf32>
    %13 = arith.subf %12, %8 : vector<8x128xf32>
    %14 = math.exp %13 : vector<8x128xf32>
    %15 = arith.mulf %11, %14 : vector<8x128xf32>
    %16 = arith.addf %15, %10 : vector<8x128xf32>
    %c0_10 = arith.constant 0 : index
    %c0_11 = arith.constant 0 : index
    %17 = vector.load %arg4[%c0_10, %c0_11] : memref<8x128xf32, #tpu.memory_space<vmem>>, vector<8x128xf32>
    tpu.vector_store %arg4[%c0_10, %c0_11], %16 {strides = array<i32>} : memref<8x128xf32, #tpu.memory_space<vmem>>, vector<8x128xf32>,
    %c0_12 = arith.constant 0 : index
    %c0_13 = arith.constant 0 : index
    %18 = vector.load %arg3[%c0_12, %c0_13] : memref<8x128xf32, #tpu.memory_space<vmem>>, vector<8x128xf32>
    tpu.vector_store %arg3[%c0_12, %c0_13], %8 {strides = array<i32>} : memref<8x128xf32, #tpu.memory_space<vmem>>, vector<8x128xf32>,
    %c0_i32_14 = arith.constant 0 : i32
    %19 = arith.cmpi eq, %arg0, %c0_i32_14 : i32
    %20 = arith.extui %19 : i1 to i32
    %c0_i32_15 = arith.constant 0 : i32
    %21 = arith.cmpi ne, %20, %c0_i32_15 : i32
    scf.if %21 {
      %c0_16 = arith.constant 0 : index
      %c0_17 = arith.constant 0 : index
      %22 = vector.load %arg3[%c0_16, %c0_17] : memref<8x128xf32, #tpu.memory_space<vmem>>, vector<8x128xf32>
      %23 = vector.shape_cast %22 : vector<8x128xf32> to vector<1x8x128xf32>
      %cst = arith.constant dense<0xFF800000> : vector<1xf32>
      %24 = vector.multi_reduction <maximumf>, %23, %cst [1, 2] : vector<1x8x128xf32> to vector<1xf32>
      %25 = vector.shape_cast %24 : vector<1xf32> to vector<1x1x1xf32>
      %26 = vector.extract %25[0, 0, 0] : f32 from vector<1x1x1xf32>
      %27 = vector.broadcast %26 : f32 to vector<1x1xf32>
      %c0_18 = arith.constant 0 : index
      %c0_19 = arith.constant 0 : index
      %28 = vector.load %arg4[%c0_18, %c0_19] : memref<8x128xf32, #tpu.memory_space<vmem>>, vector<8x128xf32>
      %c0_20 = arith.constant 0 : index
      %c0_21 = arith.constant 0 : index
      %29 = vector.load %arg3[%c0_20, %c0_21] : memref<8x128xf32, #tpu.memory_space<vmem>>, vector<8x128xf32>
      %30 = vector.broadcast %27 : vector<1x1xf32> to vector<8x128xf32>
      %31 = arith.subf %29, %30 : vector<8x128xf32>
      %32 = math.exp %31 : vector<8x128xf32>
      %33 = arith.mulf %28, %32 : vector<8x128xf32>
      %34 = vector.shape_cast %33 : vector<8x128xf32> to vector<1x8x128xf32>
      %cst_22 = arith.constant dense<0.000000e+00> : vector<1xf32>
      %35 = vector.multi_reduction <add>, %34, %cst_22 [1, 2] : vector<1x8x128xf32> to vector<1xf32>
      %36 = vector.shape_cast %35 : vector<1xf32> to vector<1x1x1xf32>
      %37 = vector.extract %36[0, 0, 0] : f32 from vector<1x1x1xf32>
      %38 = vector.broadcast %37 : f32 to vector<1x1xf32>
      %c0_23 = arith.constant 0 : index
      %c0_24 = arith.constant 0 : index
      %39 = vector.load %arg5[%c0_23, %c0_24] : memref<1x1xf32, #tpu.memory_space<vmem>>, vector<1x1xf32>
      %40 = arith.subf %39, %27 : vector<1x1xf32>
      %41 = math.exp %40 : vector<1x1xf32>
      %42 = tpu.reciprocal %38 {approx = true} : vector<1x1xf32> -> vector<1x1xf32>
      %43 = arith.mulf %41, %42 : vector<1x1xf32>
      %cst_25 = arith.constant 1.000000e+00 : f32
      %44 = vector.broadcast %cst_25 : f32 to vector<1x1xf32>
      %45 = arith.subf %44, %43 : vector<1x1xf32>
      %c0_26 = arith.constant 0 : index
      %c0_27 = arith.constant 0 : index
      %46 = vector.load %arg2[%c0_26, %c0_27] : memref<1x1xf32, #tpu.memory_space<vmem>>, vector<1x1xf32>
      tpu.vector_store %arg2[%c0_26, %c0_27], %45 {strides = array<i32>} : memref<1x1xf32, #tpu.memory_space<vmem>>, vector<1x1xf32>,
    } else {
    }
    return
  }
  func.func @transform_0(%arg0: i32) -> (i32, i32) {
    %c0_i32 = arith.constant 0 : i32
    %c0_i32_0 = arith.constant 0 : i32
    return %arg0, %c0_i32 : i32, i32
  }
  func.func @transform_1(%arg0: i32) -> (i32, i32) {
    %c0_i32 = arith.constant 0 : i32
    %c0_i32_0 = arith.constant 0 : i32
    %c0_i32_1 = arith.constant 0 : i32
    return %c0_i32, %c0_i32_0 : i32, i32
  }
}

</mosaic_0001>

<llo_original>
// kernel: _fool_loss_impl.1
$region0: #{_fool_loss_impl.1}
  #allocation0 [shape = 'u32[]', space=smem, size = 0x4, offset = 0x4, fixed_abs, tag = 'smem constant byte address 0x4 - core index']
  #allocation1 [shape = 'u32[144,128]{1,0:T(1,128)}', space=vmem, size = 0x12000, scoped, tag = 'internal scratch']
  #allocation2 [shape = 'f32[8,128]{1,0:T(8,128)}', space=vmem, size = 0x1000, scoped, tag = 'scratch operand']
  #allocation3 [shape = 'f32[8,128]{1,0:T(8,128)}', space=vmem, size = 0x1000, scoped, tag = 'scratch operand']
  #allocation4 [shape = 'f32[1,1]{1,0:T(1,128)}', space=vmem, size = 0x200, scoped, tag = 'scratch operand']
  %s0 = inlined_call_operand.vmem [shape: f32[8,128], index: 0, kind: input, shape index: {}]
  %s1 = inlined_call_operand.hbm [shape: f32[1,1], index: 1, kind: output, shape index: {}]
  %s2 = sld [smem:[#allocation0]]
  $region26: #{_fool_loss_impl.1} parent=0
    _
  %s4 = ssub.s32 1, %s2
  %s5 = scalar_select 0, %s4, %s2
  $region1: #{_fool_loss_impl.1} parent=0
    #allocation5 [shape = 'u8[512]{0}', space=vmem, size = 0x400, scoped, tag = 'output window, operand 0, single buffered']
    #allocation6 [shape = 's32[1]{0}', space=sflag, size = 0x4, scoped, tag = 'scoped memory for _fool_loss_impl.1']
    %6 = vsyncpa [#allocation6], 0
    // Predicated region
    $region2: #{_fool_loss_impl.1} parent=1 // pred_check
      _
    $region3: #{_fool_loss_impl.1} parent=1 // pred_check_branch
      %8 = sbr.rel (0) target = $region5
    $region4: #{_fool_loss_impl.1} parent=1 // pred_region
      _
    $region5: #{_fool_loss_impl.1} parent=1 // pred_fallthru
      _
    %p9 = scmp.eq.s32.totalorder 0, 0
    // Predicated region
    $region6: #{_fool_loss_impl.1} parent=1 // pred_check
      %p10 = pneg %p9
    $region7: #{_fool_loss_impl.1} parent=1 // pred_check_branch
      %12 = sbr.rel (%p10) target = $region9
    $region8: #{_fool_loss_impl.1} parent=1 // pred_region
      %13 = vst [vmem:[#allocation2] sm:$0xff] -3.4028235e+38
      %14 = vst [vmem:[#allocation3] sm:$0xff] 0.0
      %vm15 = vcmask 0
      %16 = vst.msk [vmem:[#allocation4] sm:$0x1] %vm15, 0.0
    $region9: #{_fool_loss_impl.1} parent=1 // pred_fallthru
      _
    %v17 = vld [vmem:[%s0] sm:$0xff]
    // Predicated region
    $region10: #{_fool_loss_impl.1} parent=1 // pred_check
      %p18 = pneg %p9
    $region11: #{_fool_loss_impl.1} parent=1 // pred_check_branch
      %20 = sbr.rel (%p18) target = $region13
    $region12: #{_fool_loss_impl.1} parent=1 // pred_region
      %22 = vrot.lane.b32.xlu0 %v17, 125
      %v23 = vpop.permute.xlu0 %22
      %vm25 = vcmask 0
      %26 = vst.msk [vmem:[#allocation4] sm:$0x1] %vm25, %v23
    $region13: #{_fool_loss_impl.1} parent=1 // pred_fallthru
      _
    %v27 = vld [vmem:[#allocation2] sm:$0xff]
    %v28 = vmax.f32 %v27, %v17
    %v29 = vsub.f32 %v17, %v28
    %v30 = vmul.f32 %v29, 1.442695
    %v31 = vpow.pop %v30
    %v32 = vld [vmem:[#allocation3] sm:$0xff]
    %v33 = vsub.f32 %v27, %v28
    %v34 = vmul.f32 %v33, 1.442695
    %v35 = vpow.pop %v34
    %v36 = vmul.f32 %v32, %v35
    %v37 = vadd.f32 %v36, %v31
    %38 = vst [vmem:[#allocation3] sm:$0xff] %v37
    %39 = vst [vmem:[#allocation2] sm:$0xff] %v28
    // Predicated region
    $region14: #{_fool_loss_impl.1} parent=1 // pred_check
      %p40 = pneg %p9
    $region15: #{_fool_loss_impl.1} parent=1 // pred_check_branch
      %42 = sbr.rel (%p40) target = $region17
    $region16: #{_fool_loss_impl.1} parent=1 // pred_region
      %v43 = vld [vmem:[#allocation2] sm:$0xff]
      %44 = vmax.xlane.f32.xlu0 %v43
      %v45 = vpop.xlane.xlu0 %44
      %v46 = vrot.slane %v45, 4
      %v47 = vmax.f32 %v45, %v46
      %v48 = vrot.slane %v47, 2
      %v49 = vmax.f32 %v47, %v48
      %v50 = vrot.slane %v49, 1
      %v51 = vmax.f32 %v49, %v50
      %s52 = vtos %v51
      %v53 = vstv %s52
      %v54 = vld [vmem:[#allocation3] sm:$0xff]
      %v55 = vsub.f32 %v43, %v53
      %v56 = vmul.f32 %v55, 1.442695
      %v57 = vpow.pop %v56
      %v58 = vmul.f32 %v54, %v57
      %59 = vadd.xlane.f32.xlu0 %v58
      %v60 = vpop.xlane.xlu0 %59
      %v61 = vrot.slane %v60, 4
      %v62 = vadd.f32 %v60, %v61
      %v63 = vrot.slane %v62, 2
      %v64 = vadd.f32 %v62, %v63
      %v65 = vrot.slane %v64, 1
      %v66 = vadd.f32 %v64, %v65
      %s67 = vtos %v66
      %v68 = vstv %s67
      %v69 = vld [vmem:[#allocation4] sm:$0x1]
      %v70 = vsub.f32 %v69, %v53
      %v71 = vmul.f32 %v70, 1.442695
      %v72 = vpow.pop %v71
      %v73 = vrcp.pop %v68
      %v74 = vmul.f32 %v72, %v73
      %v75 = vsub.f32 1.0, %v74
      %vm76 = vcmask 0
      %77 = vst.msk [vmem:[#allocation5] sm:$0x1] %vm76, %v75
    $region17: #{_fool_loss_impl.1} parent=1 // pred_fallthru
      _
    // Predicated region
    $region18: #{_fool_loss_impl.1} parent=1 // pred_check
      _
    $region19: #{_fool_loss_impl.1} parent=1 // pred_check_branch
      %79 = sbr.rel (0) target = $region21
    $region20: #{_fool_loss_impl.1} parent=1 // pred_region
      %s81 = ssub.s32 16, 16
      %82 = vsyncadd [#allocation6], %s81
      %s84 = sshll.u32 [#allocation5], 4
      %s85 = int_to_ptr.vmem [resolvable:$true] %s84
      %87 = dma.vmem_to_hbm [thread:$0]  %s85, 16, %s1, [#allocation6]
    $region21: #{_fool_loss_impl.1} parent=1 // pred_fallthru
      _
    // Predicated region
    $region22: #{_fool_loss_impl.1} parent=1 // pred_check
      _
    $region23: #{_fool_loss_impl.1} parent=1 // pred_check_branch
      %89 = sbr.rel (0) target = $region25
    $region24: #{_fool_loss_impl.1} parent=1 // pred_region
      %90 = dma.done [#allocation6], 16
    $region25: #{_fool_loss_impl.1} parent=1 // pred_fallthru
      _
    %91 = vsyncpa [#allocation6], 1

</llo_original>
